<compile_context>
chip_gen: v7x
topology: tpu7x:2x2x1
jax: 0.10.0
libtpu: 0.0.40
codegen_flags: <defaults>
</compile_context>

<pallas_src>
import jax
import jax.numpy as jnp
from jax.experimental import pallas as pl
from jax.experimental.pallas import tpu as pltpu


def _cdiv(a: int, b: int) -> int:
    return (a + b - 1) // b


def _round_up(x: int, m: int) -> int:
    return ((x + m - 1) // m) * m


def _round_down(x: int, m: int) -> int:
    return (x // m) * m


def _matmul_kernel(z_ref, w_ref, o_ref):
    o_ref[...] = jnp.dot(
        z_ref[...], w_ref[...], preferred_element_type=jnp.float32
    ).astype(o_ref.dtype)


def _tpu_vmem_limit_bytes() -> int:
    """Generation-aware scoped-VMEM limit passed to the Mosaic compiler."""
    kind = ""
    try:
        kind = (getattr(jax.devices()[0], "device_kind", "") or "").lower()
    except Exception:
        pass
    if "v7" in kind or "7x" in kind:
        return 48 * 1024 * 1024     # 64 MiB physical per TC -> leave headroom
    if "v6" in kind:
        return 100 * 1024 * 1024    # 128 MiB physical
    if "v5" in kind:
        return 96 * 1024 * 1024     # 128 MiB physical (default scoped is 16 MiB)
    return 48 * 1024 * 1024         # conservative fallback, safe on every gen


def prepare_off_diagonal_weight(W: jax.Array) -> jax.Array:
    """Zero W's diagonal once (parameter-side prep, hoisted out of forward)."""
    zd = W.shape[0]
    assert W.shape == (zd, zd)
    return W * (1 - jnp.eye(zd, dtype=W.dtype))


def _resident_w_spec(zd: int) -> pl.BlockSpec:
    # Constant-index, VMEM-resident W; single-buffer it where supported.
    try:
        return pl.BlockSpec((zd, zd), lambda i, j: (0, 0),
                            pipeline_mode=pl.Buffered(1))
    except (TypeError, AttributeError):
        return pl.BlockSpec((zd, zd), lambda i, j: (0, 0))


def off_diagonal_apply(z: jax.Array, W_masked: jax.Array, *,
                       tb_cap: int = 512,
                       vmem_limit_bytes: int | None = None) -> jax.Array:
    """z: (batch, z_dim), W_masked: (z_dim, z_dim) with zero diagonal."""
    B, zd = z.shape
    assert W_masked.shape == (zd, zd)

    zsize = jnp.dtype(z.dtype).itemsize
    wsize = jnp.dtype(W_masked.dtype).itemsize
    sub = {4: 8, 2: 16, 1: 32}.get(zsize, 8)   # sublane multiple for the dtype

    vmem_limit = int(vmem_limit_bytes) if vmem_limit_bytes else _tpu_vmem_limit_bytes()
    budget = vmem_limit - 4 * 1024 * 1024      # slack for compiler internals
    w_share = budget // 2                      # at most half the budget for W

    # --- W tiling along the output (N) axis; no K split -> no accumulator.
    #     W is conservatively counted as double-buffered even though the
    #     resident path requests Buffered(1).
    if 2 * zd * zd * wsize <= w_share:
        tn, n_tiles = zd, 1
        w_spec = _resident_w_spec(zd)
    else:
        tn = max(128, _round_down(w_share // (2 * zd * wsize), 128))
        tn = min(tn, _round_up(zd, 128))
        n_tiles = _cdiv(zd, tn)
        w_spec = pl.BlockSpec((zd, tn), lambda i, j: (0, j))

    # --- batch tile: <=512, >=sublane multiple, >=4 grid steps for large B,
    #     and fitting the remaining VMEM with double-buffered z / out tiles.
    remaining = max(budget - 2 * zd * tn * wsize, 0)
    per_row = 2 * zd * zsize + 2 * tn * zsize
    tb_vmem = max(sub, _round_down(remaining // per_row, sub))

    B_sub = _round_up(B, sub)
    tb = min(tb_cap, B_sub, tb_vmem)
    tb = min(tb, max(sub, _round_up(_cdiv(B, 4), sub)))   # >=4 batch steps when possible
    tb = max(tb, sub)
    if B <= sub:
        tb = B   # full-extent batch block for tiny batches (no boundary masking)

    grid = (_cdiv(B, tb), n_tiles)

    cost = pl.CostEstimate(
        flops=2 * B * zd * zd,
        transcendentals=0,
        bytes_accessed=2 * B * zd * zsize + zd * zd * wsize,
    )

    return pl.pallas_call(
        _matmul_kernel,
        out_shape=jax.ShapeDtypeStruct((B, zd), z.dtype),
        grid=grid,
        in_specs=[
            pl.BlockSpec((tb, zd), lambda i, j: (i, 0)),   # z tile (pipelined)
            w_spec,                                        # W (resident or N-tiled)
        ],
        out_specs=pl.BlockSpec((tb, tn), lambda i, j: (i, j)),
        compiler_params=pltpu.CompilerParams(
            dimension_semantics=("parallel", "parallel"),
            vmem_limit_bytes=vmem_limit,
        ),
        cost_estimate=cost,
    )(z, W_masked)


class OffDiagonal:
    """JAX/Pallas counterpart of the PyTorch OffDiagonal module."""

    def __init__(self, W: jax.Array):
        self.z_dim = W.shape[0]
        # Masked (diag-zeroed) weight is cached once; forward is a pure matmul.
        self.W_masked = prepare_off_diagonal_weight(W)

    def __call__(self, z: jax.Array) -> jax.Array:
        return off_diagonal_apply(z, self.W_masked)


if __name__ == "__main__":
    key = jax.random.PRNGKey(0)
    k_z, k_w = jax.random.split(key)

    batch, z_dim = 8, 32
    z = jax.random.normal(k_z, (batch, z_dim), dtype=jnp.float32)
    # nn.Parameter(torch.empty(...)) is uninitialized in the module; use a
    # deterministic, reproducible init instead.
    W = jax.random.normal(k_w, (z_dim, z_dim), dtype=jnp.float32) * 0.1

    module = OffDiagonal(W)          # diagonal masking happens once, here
    out = module(z)
    jax.block_until_ready(out)

    # Reference check in plain JAX.
    ref = z @ (W * (1.0 - jnp.eye(z_dim, dtype=W.dtype)))
    assert out.shape == ref.shape
    assert jnp.allclose(out, ref, atol=1e-5, rtol=1e-5), "mismatch vs reference"

    print("KERNEL_OK")
</pallas_src>

<mosaic_0001>
module attributes {stable_mosaic.version = 11 : i64} {
  func.func @_matmul_kernel(%arg0: i32, %arg1: i32, %arg2: memref<8x32xf32, #tpu.memory_space<vmem>>, %arg3: memref<32x32xf32, #tpu.memory_space<vmem>>, %arg4: memref<8x32xf32, #tpu.memory_space<vmem>>) attributes {dimension_semantics = [#tpu.dimension_semantics<parallel>, #tpu.dimension_semantics<parallel>], iteration_bounds = array<i64: 1, 1>, scalar_prefetch = 0 : i64, scratch_operands = 0 : i64, tpu.core_type = #tpu.core_type<tc>, window_params = [{transform_indices = @transform_0, window_bounds = array<i64: 8, 32>}, {pipeline_mode = #tpu.pipeline_mode<synchronous>, transform_indices = @transform_1, window_bounds = array<i64: 32, 32>}, {transform_indices = @transform_2, window_bounds = array<i64: 8, 32>}]} {
    %c0 = arith.constant 0 : index
    %c0_0 = arith.constant 0 : index
    %0 = vector.load %arg2[%c0, %c0_0] : memref<8x32xf32, #tpu.memory_space<vmem>>, vector<8x32xf32>
    %c0_1 = arith.constant 0 : index
    %c0_2 = arith.constant 0 : index
    %1 = vector.load %arg3[%c0_1, %c0_2] : memref<32x32xf32, #tpu.memory_space<vmem>>, vector<32x32xf32>
    %cst = arith.constant dense<0.000000e+00> : vector<8x32xf32>
    %2 = tpu.matmul %0, %1, %cst {dimension_numbers = #tpu.dot_dimension_numbers<[1], [0], [0], [1], [0, 0, 1, 1], [], []>} : vector<8x32xf32>, vector<32x32xf32>, vector<8x32xf32> -> vector<8x32xf32>
    %c0_3 = arith.constant 0 : index
    %c0_4 = arith.constant 0 : index
    %3 = vector.load %arg4[%c0_3, %c0_4] : memref<8x32xf32, #tpu.memory_space<vmem>>, vector<8x32xf32>
    tpu.vector_store %arg4[%c0_3, %c0_4], %2 {strides = array<i32>} : memref<8x32xf32, #tpu.memory_space<vmem>>, vector<8x32xf32>,
    return
  }
  func.func @transform_0(%arg0: i32, %arg1: i32) -> (i32, i32) {
    %c0_i32 = arith.constant 0 : i32
    %c0_i32_0 = arith.constant 0 : i32
    return %arg0, %c0_i32 : i32, i32
  }
  func.func @transform_1(%arg0: i32, %arg1: i32) -> (i32, i32) {
    %c0_i32 = arith.constant 0 : i32
    %c0_i32_0 = arith.constant 0 : i32
    %c0_i32_1 = arith.constant 0 : i32
    return %c0_i32, %c0_i32_0 : i32, i32
  }
  func.func @transform_2(%arg0: i32, %arg1: i32) -> (i32, i32) {
    %c0_i32 = arith.constant 0 : i32
    return %arg0, %arg1 : i32, i32
  }
}

</mosaic_0001>

<llo_original>
// kernel: tpu_custom_call.1
$region0: #{tpu_custom_call.1}
  #allocation0 [shape = 'u32[]', space=smem, size = 0x4, offset = 0x4, fixed_abs, tag = 'smem constant byte address 0x4 - core index']
  #allocation1 [shape = 'u32[144,128]{1,0:T(1,128)}', space=vmem, size = 0x12000, scoped, tag = 'internal scratch']
  %s0 = inlined_call_operand.hbm [shape: f32[8,32], index: 0, kind: input, shape index: {}]
  %s1 = inlined_call_operand.hbm [shape: f32[32,32], index: 1, kind: input, shape index: {}]
  %s2 = inlined_call_operand.hbm [shape: f32[8,32], index: 2, kind: output, shape index: {}]
  %s3 = sld [smem:[#allocation0]]
  $region26: #{tpu_custom_call.1} parent=0
    _
  %s5 = ssub.s32 1, %s3
  %s6 = scalar_select 0, %s5, %s3
  $region1: #{tpu_custom_call.1} parent=0
    #allocation2 [shape = 'u8[4096]{0}', space=vmem, size = 0x1000, scoped, tag = 'input window, operand 0, single buffered']
    #allocation3 [shape = 's32[1]{0}', space=sflag, size = 0x4, scoped, tag = 'scoped memory for tpu_custom_call.1']
    #allocation4 [shape = 's32[1]{0}', space=sflag, size = 0x4, scoped, tag = 'scoped memory for tpu_custom_call.1']
    #allocation5 [shape = 'u8[16384]{0}', space=vmem, size = 0x4000, scoped, tag = 'input window, operand 1, single buffered']
    #allocation6 [shape = 's32[1]{0}', space=sflag, size = 0x4, scoped, tag = 'scoped memory for tpu_custom_call.1']
    #allocation7 [shape = 'u8[4096]{0}', space=vmem, size = 0x1000, scoped, tag = 'output window, operand 0, single buffered']
    %7 = vsyncpa [#allocation3], 0
    %8 = vsyncpa [#allocation6], 0
    %9 = vsyncpa [#allocation4], 0
    // Predicated region
    $region2: #{tpu_custom_call.1} parent=1 // pred_check
      _
    $region3: #{tpu_custom_call.1} parent=1 // pred_check_branch
      %11 = sbr.rel (0) target = $region5
    $region4: #{tpu_custom_call.1} parent=1 // pred_region
      %s13 = ssub.s32 128, 128
      %14 = vsyncadd [#allocation3], %s13
      %s16 = sshll.u32 [#allocation2], 4
      %s17 = int_to_ptr.vmem [resolvable:$true] %s16
      %19 = dma.hbm_to_vmem [thread:$0]  %s0, 128, %s17, [#allocation3]
    $region5: #{tpu_custom_call.1} parent=1 // pred_fallthru
      _
    // Predicated region
    $region6: #{tpu_custom_call.1} parent=1 // pred_check
      _
    $region7: #{tpu_custom_call.1} parent=1 // pred_check_branch
      %21 = sbr.rel (0) target = $region9
    $region8: #{tpu_custom_call.1} parent=1 // pred_region
      %s23 = ssub.s32 512, 512
      %24 = vsyncadd [#allocation6], %s23
      %s25 = sshll.u32 [#allocation5], 4
      %s26 = int_to_ptr.vmem [resolvable:$true] %s25
      %31 = dma.hbm_to_vmem [thread:$0]  %s1, 512, %s26, [#allocation6], 128, 128, 8
    $region9: #{tpu_custom_call.1} parent=1 // pred_fallthru
      _
    // Predicated region
    $region10: #{tpu_custom_call.1} parent=1 // pred_check
      _
    $region11: #{tpu_custom_call.1} parent=1 // pred_check_branch
      %33 = sbr.rel (0) target = $region13
    $region12: #{tpu_custom_call.1} parent=1 // pred_region
      %34 = dma.done [#allocation3], 128
    $region13: #{tpu_custom_call.1} parent=1 // pred_fallthru
      _
    // Predicated region
    $region14: #{tpu_custom_call.1} parent=1 // pred_check
      _
    $region15: #{tpu_custom_call.1} parent=1 // pred_check_branch
      %36 = sbr.rel (0) target = $region17
    $region16: #{tpu_custom_call.1} parent=1 // pred_region
      %37 = dma.done [#allocation6], 512
    $region17: #{tpu_custom_call.1} parent=1 // pred_fallthru
      _
    %v38 = vld [vmem:[#allocation2] sm:$0xff]
    %v39 = vld [vmem:[#allocation5] sm:$0xff]
    %v40 = vld [vmem:[#allocation5 + $0x8] sm:$0xff]
    %v41 = vld [vmem:[#allocation5 + $0x10] sm:$0xff]
    %v42 = vld [vmem:[#allocation5 + $0x18] sm:$0xff]
    %vm43 = vcmask 261120
    %v45 = vsel %vm43, %v38, 0
    %47 = vmatprep.subr.mxu0 0.0
    %48 = vmatpush1.msra.mxu0 %v39
    %49 = vmatprep.subr.mxu0 0.0
    %50 = vmatpush1.msra.mxu0 %v40
    %51 = vmatprep.subr.mxu0 0.0
    %52 = vmatpush1.msra.mxu0 %v41
    %53 = vmatprep.subr.mxu0 0.0
    %54 = vmatpush1.msra.mxu0 %v42
    %55 = vmatprep.subr.mxu0 0.0
    %56 = vmatpush1.msra.mxu0 0.0
    %57 = vmatprep.subr.mxu0 0.0
    %58 = vmatpush1.msra.mxu0 0.0
    %59 = vmatprep.subr.mxu0 0.0
    %60 = vmatpush1.msra.mxu0 0.0
    %61 = vmatprep.subr.mxu0 0.0
    %62 = vmatpush1.msra.mxu0 0.0
    %63 = vmatprep.subr.mxu0 0.0
    %64 = vmatpush1.msra.mxu0 0.0
    %65 = vmatprep.subr.mxu0 0.0
    %66 = vmatpush1.msra.mxu0 0.0
    %67 = vmatprep.subr.mxu0 0.0
    %68 = vmatpush1.msra.mxu0 0.0
    %69 = vmatprep.subr.mxu0 0.0
    %70 = vmatpush1.msra.mxu0 0.0
    %71 = vmatprep.subr.mxu0 0.0
    %72 = vmatpush1.msra.mxu0 0.0
    %73 = vmatprep.subr.mxu0 0.0
    %74 = vmatpush1.msra.mxu0 0.0
    %75 = vmatprep.subr.mxu0 0.0
    %76 = vmatpush1.msra.mxu0 0.0
    %77 = vmatprep.subr.mxu0 0.0
    %78 = vmatpush1.msra.mxu0 0.0
    %79 = vmatprep.subr.mxu0 0.0
    %80 = vmatpush1.msra.mxu0 0.0
    %81 = vmatprep.subr.mxu0 0.0
    %82 = vmatpush1.msra.mxu0 0.0
    %83 = vmatprep.subr.mxu0 0.0
    %84 = vmatpush1.msra.mxu0 0.0
    %85 = vmatprep.subr.mxu0 0.0
    %86 = vmatpush1.msra.mxu0 0.0
    %87 = vmatprep.subr.mxu0 0.0
    %88 = vmatpush1.msra.mxu0 0.0
    %89 = vmatprep.subr.mxu0 0.0
    %90 = vmatpush1.msra.mxu0 0.0
    %91 = vmatprep.subr.mxu0 0.0
    %92 = vmatpush1.msra.mxu0 0.0
    %93 = vmatprep.subr.mxu0 0.0
    %94 = vmatpush1.msra.mxu0 0.0
    %95 = vmatprep.subr.mxu0 0.0
    %96 = vmatpush1.msra.mxu0 0.0
    %97 = vmatprep.subr.mxu0 0.0
    %98 = vmatpush1.msra.mxu0 0.0
    %99 = vmatprep.subr.mxu0 0.0
    %100 = vmatpush1.msra.mxu0 0.0
    %101 = vmatprep.subr.mxu0 0.0
    %102 = vmatpush1.msra.mxu0 0.0
    %103 = vmatprep.subr.mxu0 0.0
    %104 = vmatpush1.msra.mxu0 0.0
    %105 = vmatprep.subr.mxu0 0.0
    %106 = vmatpush1.msra.mxu0 0.0
    %107 = vmatprep.subr.mxu0 0.0
    %108 = vmatpush1.msra.mxu0 0.0
    %109 = vmatprep.subr.mxu0 0.0
    %110 = vmatpush1.msra.mxu0 0.0
    %111 = vmatprep.mubr.f32.mxu0 0.0
    %112 = vmatmul.mubr.f32.gmra.mrb[0].mxu0 %v45
    %v113 = vpop.f32.mrb[0].mxu0
    %v114 = vadd.f32 0.0, %v113
    %v115 = vpop.f32.mrb[0].mxu0
    %116 = vdwg.mxu0
    %117 = vst.msk [vmem:[#allocation7] sm:$0xff] %vm43, %v114
    // Predicated region
    $region18: #{tpu_custom_call.1} parent=1 // pred_check
      _
    $region19: #{tpu_custom_call.1} parent=1 // pred_check_branch
      %119 = sbr.rel (0) target = $region21
    $region20: #{tpu_custom_call.1} parent=1 // pred_region
      %s121 = ssub.s32 128, 128
      %122 = vsyncadd [#allocation4], %s121
      %s124 = sshll.u32 [#allocation7], 4
      %s125 = int_to_ptr.vmem [resolvable:$true] %s124
      %127 = dma.vmem_to_hbm [thread:$0]  %s125, 128, %s2, [#allocation4]
    $region21: #{tpu_custom_call.1} parent=1 // pred_fallthru
      _
    // Predicated region
    $region22: #{tpu_custom_call.1} parent=1 // pred_check
      _
    $region23: #{tpu_custom_call.1} parent=1 // pred_check_branch
      %129 = sbr.rel (0) target = $region25
    $region24: #{tpu_custom_call.1} parent=1 // pred_region
      %130 = dma.done [#allocation4], 128
    $region25: #{tpu_custom_call.1} parent=1 // pred_fallthru
      _
    %131 = vsyncpa [#allocation3], 1
    %132 = vsyncpa [#allocation6], 1
    %133 = vsyncpa [#allocation4], 1

</llo_original>
